<compile_context>
chip_gen: v6e
topology: v6e:2x2x1
jax: 0.10.0
libtpu: 0.0.40
codegen_flags: <defaults>
</compile_context>

<pallas_src>
import jax
import jax.numpy as jnp
from jax.experimental import pallas as pl
from jax.experimental.pallas import tpu as pltpu


def _round_up(x, m):
    return (x + m - 1) // m * m


# ----------------------------- Pallas kernel ------------------------------- #
def _make_conv_kernel(nb: int, mrp: int, ws_sup: int):
    """Fused stride-2 conv for NB batch elements, single MXU dot.

    x_ref: (NB, Lp, C4p)   bf16 space-to-depth slab, spatial flattened row-major
    w_ref: (4*C4p, Nn)     bf16 fused [w_mu | w_logvar], taps flattened into K
    b_ref: (1, Nn)         f32 fused bias (zero-padded to Nn lanes)
    o_ref: (1, NB*MRp, Nn) bf16 output slab (junk rows/cols sliced in wrapper)
    """
    taps = (0, 1, ws_sup, ws_sup + 1)   # (dh, dw) = (0,0), (0,1), (1,0), (1,1)

    def kernel(x_ref, w_ref, b_ref, o_ref):
        # Build the (NB*MRp, 4*C4p) lhs with STATIC slices.
        # NOTE (review item 9): sublane offsets 1, ws_sup, ws_sup+1 are not
        # multiples of 8; for production sizes pad ws_sup to a sublane multiple
        # so the dh-shifted slices stay aligned.
        rows = []
        for b in range(nb):
            pieces = [x_ref[b, s:s + mrp, :] for s in taps]
            rows.append(jnp.concatenate(pieces, axis=-1))        # (MRp, 4*C4p)
        lhs = rows[0] if nb == 1 else jnp.concatenate(rows, axis=0)
        # Single MXU call, K = 4*C4p, f32 accumulation.
        acc = jnp.dot(lhs, w_ref[...], preferred_element_type=jnp.float32)
        o_ref[0] = (acc + b_ref[...]).astype(o_ref.dtype)

    return kernel


def _fused_conv_s2(xs, wd_flat, b_cat, *, nb, ws_sup, mrp):
    """xs: (N, Lp, C4p) bf16, wd_flat: (4*C4p, Nn) bf16, b_cat: (1, Nn) f32
    -> (N // nb, nb*MRp, Nn) bf16."""
    N, Lp, C4p = xs.shape
    K4, Nn = wd_flat.shape
    G = N // nb
    return pl.pallas_call(
        _make_conv_kernel(nb, mrp, ws_sup),
        out_shape=jax.ShapeDtypeStruct((G, nb * mrp, Nn), jnp.bfloat16),
        grid_spec=pltpu.PrefetchScalarGridSpec(
            num_scalar_prefetch=0,
            grid=(G,),
            in_specs=[
                pl.BlockSpec((nb, Lp, C4p), lambda g: (g, 0, 0)),  # NB batch slabs / step
                pl.BlockSpec((K4, Nn), lambda g: (0, 0)),          # resident fused weights
                pl.BlockSpec((1, Nn), lambda g: (0, 0)),           # resident fused bias (f32)
            ],
            out_specs=pl.BlockSpec((1, nb * mrp, Nn), lambda g: (g, 0, 0)),
        ),
        compiler_params=pltpu.CompilerParams(
            dimension_semantics=("parallel",),        # >=2 steps keeps both v7x TCs busy
            vmem_limit_bytes=32 * 1024 * 1024,
        ),
    )(xs, wd_flat, b_cat)


# ------------------------------ JAX glue ------------------------------------ #
def encode_mean_logvar(x_nchw, params, *, batch_per_step=1):
    """Forward pass of Encode_Mean_Logvar. Returns (mu, logvar) in NCHW (f32)."""
    w_mu, b_mu, w_lv, b_lv = params
    Cout = w_mu.shape[0]
    N, C, H, W = x_nchw.shape
    assert N % batch_per_step == 0
    Hout = (H + 2 - 3) // 2 + 1
    Wout = (W + 2 - 3) // 2 + 1

    # ---- input: NCHW -> padded NHWC -> 2x2 space-to-depth -> flat bf16 rows.
    # Single fused XLA relayout chain; cast to bf16 up front so the relayout
    # moves half the bytes (kernel is HBM-bound at these sizes).
    pad_b = 1 + (H % 2)
    pad_r = 1 + (W % 2)
    x_nhwc = jnp.transpose(x_nchw, (0, 2, 3, 1)).astype(jnp.bfloat16)
    xp = jnp.pad(x_nhwc, ((0, 0), (1, pad_b), (1, pad_r), (0, 0)))
    Hs = (H + 1 + pad_b) // 2          # = Hout + 1
    Ws = (W + 1 + pad_r) // 2          # = Wout + 1

    C4 = 4 * C
    xs = xp.reshape(N, Hs, 2, Ws, 2, C).transpose(0, 1, 3, 2, 4, 5)  # (N,Hs,Ws,ph,pw,C)
    xs = xs.reshape(N, Hs * Ws, C4)

    C4p = _round_up(C4, 16)            # bf16 sublane-packing friendly; no lane blowup
    L = Hs * Ws
    MR = Hout * Ws                     # useful output rows per batch element
    MRp = _round_up(MR, 16)            # aligned rows per batch in the lhs / output slab
    # Max read index per tap is (Ws+1) + MRp - 1; pad rows beyond L are ZEROS,
    # which the (dh=1,dw=1) over-read relies on.
    Lp = _round_up(Ws + 1 + MRp, 16)
    xs = jnp.pad(xs, ((0, 0), (0, Lp - L), (0, C4p - C4)))

    # ---- weights: fuse mu|logvar on the output axis, repack the 3x3 taps into
    # 4 super-taps, flatten (tap, C4p) into ONE contraction axis (K = 4*C4p).
    # Nn = 128 exactly for this module (lane-dense stores, not padded further).
    O2 = 2 * Cout
    Nn = _round_up(O2, 128)
    w_cat = jnp.concatenate([w_mu, w_lv], axis=0)                    # (O2, C, 3, 3)
    w4 = jnp.pad(w_cat, ((0, 0), (0, 0), (0, 1), (0, 1)))            # (O2, C, 4, 4)
    wd = w4.reshape(O2, C, 2, 2, 2, 2).transpose(2, 4, 3, 5, 1, 0)   # (dh,dw,ph,pw,C,O2)
    wd = wd.reshape(4, C4, O2)
    wd = jnp.pad(wd, ((0, 0), (0, C4p - C4), (0, Nn - O2)))
    wd_flat = wd.reshape(4 * C4p, Nn).astype(jnp.bfloat16)           # (K4, Nn)
    b_cat = jnp.pad(jnp.concatenate([b_mu, b_lv]), (0, Nn - O2))[None, :]  # f32 (1, Nn)

    # ---- fused Pallas conv (one bf16 MXU dot per grid step) ----
    out = _fused_conv_s2(xs, wd_flat, b_cat,
                         nb=batch_per_step, ws_sup=Ws, mrp=MRp)      # (G, NB*MRp, Nn)

    # ---- drop junk rows/columns & padded lanes, back to NCHW (module contract).
    # (Downstream NHWC consumers could read the padded slab directly and skip this.)
    out = out.reshape(N, MRp, Nn)[:, :MR].reshape(N, Hout, Ws, Nn)
    out = out[:, :, :Wout, :O2].astype(jnp.float32)                  # (N,Hout,Wout,2*Cout)
    mu = jnp.transpose(out[..., :Cout], (0, 3, 1, 2))
    logvar = jnp.transpose(out[..., Cout:], (0, 3, 1, 2))
    return mu, logvar


def init_params(key, c_in, c_out):
    k1, k2, k3, k4 = jax.random.split(key, 4)
    scale = 1.0 / jnp.sqrt(c_in * 9.0)
    w_mu = jax.random.uniform(k1, (c_out, c_in, 3, 3), jnp.float32, -scale, scale)
    b_mu = jax.random.uniform(k2, (c_out,), jnp.float32, -scale, scale)
    w_lv = jax.random.uniform(k3, (c_out, c_in, 3, 3), jnp.float32, -scale, scale)
    b_lv = jax.random.uniform(k4, (c_out,), jnp.float32, -scale, scale)
    return (w_mu, b_mu, w_lv, b_lv)


if __name__ == "__main__":
    key = jax.random.PRNGKey(0)
    kx, kp = jax.random.split(key)

    # Small shapes consistent with the module (in_ch -> out_ch 3x3/s2/p1 conv).
    N, C_IN, C_OUT, H, W = 2, 4, 8, 16, 16
    x = jax.random.normal(kx, (N, C_IN, H, W), jnp.float32)
    params = init_params(kp, C_IN, C_OUT)

    # Reference: plain-JAX conv (same semantics as PyTorch Conv2d forward).
    w_mu, b_mu, w_lv, b_lv = params

    def ref_conv(x, w, b):
        y = jax.lax.conv_general_dilated(
            x, w, window_strides=(2, 2), padding=((1, 1), (1, 1)),
            dimension_numbers=("NCHW", "OIHW", "NCHW"),
            precision=jax.lax.Precision.HIGHEST)
        return y + b[None, :, None, None]

    mu_ref = ref_conv(x, w_mu, b_mu)
    lv_ref = ref_conv(x, w_lv, b_lv)

    fwd = jax.jit(encode_mean_logvar, static_argnames=("batch_per_step",))

    # batch_per_step=1: grid of 2 "parallel" steps (keeps both v7x TCs busy).
    # batch_per_step=2: batch folded into M -> one fat dot (better for 1-TC v5e/v6e).
    for nb in (1, 2):
        mu, logvar = fwd(x, params, batch_per_step=nb)
        jax.block_until_ready((mu, logvar))
        assert mu.shape == (N, C_OUT, H // 2, W // 2)
        assert logvar.shape == (N, C_OUT, H // 2, W // 2)
        # Deliberate bf16 inputs/weights + f32 MXU accumulation + bf16 output
        # slab vs a Precision.HIGHEST f32 reference -> 3e-2 tolerance.
        assert jnp.allclose(mu, mu_ref, atol=3e-2, rtol=3e-2), f"mu mismatch (nb={nb})"
        assert jnp.allclose(logvar, lv_ref, atol=3e-2, rtol=3e-2), f"logvar mismatch (nb={nb})"

    print("KERNEL_OK")
</pallas_src>

<mosaic_0001>
module attributes {stable_mosaic.version = 11 : i64} {
  func.func @kernel(%arg0: i32, %arg1: memref<1x96x16xbf16, #tpu.memory_space<vmem>>, %arg2: memref<64x128xbf16, #tpu.memory_space<vmem>>, %arg3: memref<1x128xf32, #tpu.memory_space<vmem>>, %arg4: memref<1x80x128xbf16, #tpu.memory_space<vmem>>) attributes {dimension_semantics = [#tpu.dimension_semantics<parallel>], iteration_bounds = array<i64: 2>, scalar_prefetch = 0 : i64, scratch_operands = 0 : i64, tpu.core_type = #tpu.core_type<tc>, window_params = [{transform_indices = @transform_0, window_bounds = array<i64: 1, 96, 16>}, {pipeline_mode = #tpu.pipeline_mode<synchronous>, transform_indices = @transform_1, window_bounds = array<i64: 64, 128>}, {pipeline_mode = #tpu.pipeline_mode<synchronous>, transform_indices = @transform_2, window_bounds = array<i64: 1, 128>}, {transform_indices = @transform_3, window_bounds = array<i64: 1, 80, 128>}]} {
    %c0 = arith.constant 0 : index
    %c0_0 = arith.constant 0 : index
    %c0_1 = arith.constant 0 : index
    %0 = vector.load %arg1[%c0, %c0_0, %c0_1] : memref<1x96x16xbf16, #tpu.memory_space<vmem>>, vector<1x80x16xbf16>
    %1 = vector.shape_cast %0 : vector<1x80x16xbf16> to vector<80x16xbf16>
    %c0_2 = arith.constant 0 : index
    %c1 = arith.constant 1 : index
    %c0_3 = arith.constant 0 : index
    %2 = vector.load %arg1[%c0_2, %c1, %c0_3] : memref<1x96x16xbf16, #tpu.memory_space<vmem>>, vector<1x80x16xbf16>
    %3 = vector.shape_cast %2 : vector<1x80x16xbf16> to vector<80x16xbf16>
    %c0_4 = arith.constant 0 : index
    %c9 = arith.constant 9 : index
    %c0_5 = arith.constant 0 : index
    %4 = vector.load %arg1[%c0_4, %c9, %c0_5] : memref<1x96x16xbf16, #tpu.memory_space<vmem>>, vector<1x80x16xbf16>
    %5 = vector.shape_cast %4 : vector<1x80x16xbf16> to vector<80x16xbf16>
    %c0_6 = arith.constant 0 : index
    %c10 = arith.constant 10 : index
    %c0_7 = arith.constant 0 : index
    %6 = vector.load %arg1[%c0_6, %c10, %c0_7] : memref<1x96x16xbf16, #tpu.memory_space<vmem>>, vector<1x80x16xbf16>
    %7 = vector.shape_cast %6 : vector<1x80x16xbf16> to vector<80x16xbf16>
    %8 = tpu.concatenate %1, %3, %5, %7 in 1 : vector<80x16xbf16>, vector<80x16xbf16>, vector<80x16xbf16>, vector<80x16xbf16> -> vector<80x64xbf16>
    %c0_8 = arith.constant 0 : index
    %c0_9 = arith.constant 0 : index
    %9 = vector.load %arg2[%c0_8, %c0_9] : memref<64x128xbf16, #tpu.memory_space<vmem>>, vector<64x128xbf16>
    %cst = arith.constant dense<0.000000e+00> : vector<80x128xf32>
    %10 = tpu.matmul %8, %9, %cst {dimension_numbers = #tpu.dot_dimension_numbers<[1], [0], [0], [1], [0, 0, 1, 1], [], []>} : vector<80x64xbf16>, vector<64x128xbf16>, vector<80x128xf32> -> vector<80x128xf32>
    %c0_10 = arith.constant 0 : index
    %c0_11 = arith.constant 0 : index
    %11 = vector.load %arg3[%c0_10, %c0_11] : memref<1x128xf32, #tpu.memory_space<vmem>>, vector<1x128xf32>
    %12 = vector.broadcast %11 : vector<1x128xf32> to vector<80x128xf32>
    %13 = arith.addf %10, %12 : vector<80x128xf32>
    %14 = arith.truncf %13 : vector<80x128xf32> to vector<80x128xbf16>
    %c0_12 = arith.constant 0 : index
    %c0_13 = arith.constant 0 : index
    %c0_14 = arith.constant 0 : index
    %15 = vector.load %arg4[%c0_12, %c0_13, %c0_14] : memref<1x80x128xbf16, #tpu.memory_space<vmem>>, vector<1x80x128xbf16>
    %16 = vector.shape_cast %15 : vector<1x80x128xbf16> to vector<80x128xbf16>
    %17 = vector.shape_cast %14 : vector<80x128xbf16> to vector<1x80x128xbf16>
    tpu.vector_store %arg4[%c0_12, %c0_13, %c0_14], %17 {strides = array<i32>} : memref<1x80x128xbf16, #tpu.memory_space<vmem>>, vector<1x80x128xbf16>,
    return
  }
  func.func @transform_0(%arg0: i32) -> (i32, i32, i32) {
    %c0_i32 = arith.constant 0 : i32
    %c0_i32_0 = arith.constant 0 : i32
    %c0_i32_1 = arith.constant 0 : i32
    return %arg0, %c0_i32, %c0_i32_0 : i32, i32, i32
  }
  func.func @transform_1(%arg0: i32) -> (i32, i32) {
    %c0_i32 = arith.constant 0 : i32
    %c0_i32_0 = arith.constant 0 : i32
    %c0_i32_1 = arith.constant 0 : i32
    return %c0_i32, %c0_i32_0 : i32, i32
  }
  func.func @transform_2(%arg0: i32) -> (i32, i32) {
    %c0_i32 = arith.constant 0 : i32
    %c0_i32_0 = arith.constant 0 : i32
    %c0_i32_1 = arith.constant 0 : i32
    return %c0_i32, %c0_i32_0 : i32, i32
  }
  func.func @transform_3(%arg0: i32) -> (i32, i32, i32) {
    %c0_i32 = arith.constant 0 : i32
    %c0_i32_0 = arith.constant 0 : i32
    %c0_i32_1 = arith.constant 0 : i32
    return %arg0, %c0_i32, %c0_i32_0 : i32, i32, i32
  }
}

</mosaic_0001>

<llo_original>
// kernel: encode_mean_logvar.1
$region0: #{encode_mean_logvar.1}
  #allocation0 [shape = 'u32[]', space=smem, size = 0x4, offset = 0x4, fixed_abs, tag = 'smem constant byte address 0x4 - core index']
  #allocation1 [shape = 'u32[144,128]{1,0:T(1,128)}', space=vmem, size = 0x12000, scoped, tag = 'internal scratch']
  %s0 = inlined_call_operand.vmem [shape: bf16[2,96,16], index: 0, kind: input, shape index: {}]
  %s1 = inlined_call_operand.vmem [shape: bf16[64,128], index: 1, kind: input, shape index: {}]
  %s2 = inlined_call_operand.vmem [shape: f32[1,128], index: 2, kind: input, shape index: {}]
  %s3 = inlined_call_operand.vmem [shape: bf16[2,80,128], index: 3, kind: output, shape index: {}]
  %s4 = sld [smem:[#allocation0]]
  $region45: #{encode_mean_logvar.1} parent=0
    _
  %s6 = ssub.s32 1, %s4
  %s7 = scalar_select 0, %s6, %s4
  loop: start=0, step=1, limit=4
  $region2: #{encode_mean_logvar.1} parent=0 // loop_pre_header
    _
  $region3: #{encode_mean_logvar.1} parent=0 // loop_header
    %s9 = sphi 0, %s13
    %p10 = scmp.ge.s32.totalorder %s9, 4
    %s19 = sphi 0, %s21
    %s22 = sphi 0, %s19
    %s23 = sphi 0, %s22
    %s39 = sphi 0, %s23
    %s43 = sphi 0, %s43
    %s45 = sphi 0, %s43
    %s46 = sphi 0, %s45
    %s60 = sphi 0, %s46
    %s64 = sphi 0, %s64
    %s66 = sphi 0, %s64
    %s67 = sphi 0, %s66
    %s81 = sphi 0, %s67
    %s87 = sphi 0, %s89
    %s90 = sphi 0, %s87
    %s91 = sphi 0, %s90
    %s107 = sphi 0, %s91
  $region4: #{encode_mean_logvar.1} parent=0 // loop_header_branch
    %12 = sbr.rel (%p10) target = $region8
  $region5: #{encode_mean_logvar.1} parent=0 // loop_body
    %s14 = ssub.s32 %s9, 1
    %s15 = ssub.s32 %s9, 2
    %s16 = sadd.s32 %s9, 1
    %s17 = ssub.s32 %s9, %s16
    %p18 = scmp.eq.s32.totalorder %s17, 0
    %s20 = sadd.s32 %s19, 1
    %s21 = scalar_select %p18, %s19, %s20
    %p24 = pneg %p18
    %p25 = scmp.eq.s32.totalorder %s9, 1
    %p26 = por %p24, %p25
    %p27 = scmp.ne.s32.totalorder %s19, %s22
    %p28 = scmp.eq.s32.totalorder %s9, 0
    %p29 = por %p27, %p28
    %p30 = scmp.ne.s32.totalorder %s19, %s22
    %p31 = scmp.eq.s32.totalorder %s14, 1
    %p32 = por %p30, %p31
    %p33 = scmp.ne.s32.totalorder %s22, %s23
    %p34 = scmp.eq.s32.totalorder %s14, 0
    %p35 = por %p33, %p34
    %p36 = scmp.ne.s32.totalorder %s22, %s23
    %p37 = scmp.eq.s32.totalorder %s15, 1
    %p38 = por %p36, %p37
    %p40 = scmp.ne.s32.totalorder %s23, %s39
    %p41 = scmp.eq.s32.totalorder %s15, 0
    %p42 = por %p40, %p41
    %s44 = sadd.s32 %s43, 1
    %p47 = scmp.eq.s32.totalorder %s9, 1
    %p48 = scmp.ne.s32.totalorder %s43, %s45
    %p49 = scmp.eq.s32.totalorder %s9, 0
    %p50 = por %p48, %p49
    %p51 = scmp.ne.s32.totalorder %s43, %s45
    %p52 = scmp.eq.s32.totalorder %s14, 1
    %p53 = por %p51, %p52
    %p54 = scmp.ne.s32.totalorder %s45, %s46
    %p55 = scmp.eq.s32.totalorder %s14, 0
    %p56 = por %p54, %p55
    %p57 = scmp.ne.s32.totalorder %s45, %s46
    %p58 = scmp.eq.s32.totalorder %s15, 1
    %p59 = por %p57, %p58
    %p61 = scmp.ne.s32.totalorder %s46, %s60
    %p62 = scmp.eq.s32.totalorder %s15, 0
    %p63 = por %p61, %p62
    %s65 = sadd.s32 %s64, 1
    %p68 = scmp.eq.s32.totalorder %s9, 1
    %p69 = scmp.ne.s32.totalorder %s64, %s66
    %p70 = scmp.eq.s32.totalorder %s9, 0
    %p71 = por %p69, %p70
    %p72 = scmp.ne.s32.totalorder %s64, %s66
    %p73 = scmp.eq.s32.totalorder %s14, 1
    %p74 = por %p72, %p73
    %p75 = scmp.ne.s32.totalorder %s66, %s67
    %p76 = scmp.eq.s32.totalorder %s14, 0
    %p77 = por %p75, %p76
    %p78 = scmp.ne.s32.totalorder %s66, %s67
    %p79 = scmp.eq.s32.totalorder %s15, 1
    %p80 = por %p78, %p79
    %p82 = scmp.ne.s32.totalorder %s67, %s81
    %p83 = scmp.eq.s32.totalorder %s15, 0
    %p84 = por %p82, %p83
    %s85 = ssub.s32 %s9, %s16
    %p86 = scmp.eq.s32.totalorder %s85, 0
    %s88 = sadd.s32 %s87, 1
    %s89 = scalar_select %p86, %s87, %s88
    %p92 = pneg %p86
    %p93 = scmp.eq.s32.totalorder %s9, 1
    %p94 = por %p92, %p93
    %p95 = scmp.ne.s32.totalorder %s87, %s90
    %p96 = scmp.eq.s32.totalorder %s9, 0
    %p97 = por %p95, %p96
    %p98 = scmp.ne.s32.totalorder %s87, %s90
    %p99 = scmp.eq.s32.totalorder %s14, 1
    %p100 = por %p98, %p99
    %p101 = scmp.ne.s32.totalorder %s90, %s91
    %p102 = scmp.eq.s32.totalorder %s14, 0
    %p103 = por %p101, %p102
    %p104 = scmp.ne.s32.totalorder %s90, %s91
    %p105 = scmp.eq.s32.totalorder %s15, 1
    %p106 = por %p104, %p105
    %p108 = scmp.ne.s32.totalorder %s91, %s107
    %p109 = scmp.eq.s32.totalorder %s15, 0
    %p110 = por %p108, %p109
    %p111 = scmp.le.s32.totalorder 1, %s9
    %p112 = scmp.lt.s32.totalorder %s9, 3
    %p113 = pnand %p111, %p112
    %p114 = pneg %p113
    // Predicated region
    $region9: #{encode_mean_logvar.1} parent=5 // pred_check
      _
    $region10: #{encode_mean_logvar.1} parent=5 // pred_check_branch
      %116 = sbr.rel (%p113) target = $region12
    $region11: #{encode_mean_logvar.1} parent=5 // pred_region
      %s117 = ssub.s32 %s9, 1
      // Predicated region
      $region13: #{encode_mean_logvar.1} parent=11 // pred_check
        %p118 = pneg %p56
      $region14: #{encode_mean_logvar.1} parent=11 // pred_check_branch
        %120 = sbr.rel (%p118) target = $region16
      $region15: #{encode_mean_logvar.1} parent=11 // pred_region
        _
      $region16: #{encode_mean_logvar.1} parent=11 // pred_fallthru
        _
      // Predicated region
      $region17: #{encode_mean_logvar.1} parent=11 // pred_check
        %p121 = pneg %p77
      $region18: #{encode_mean_logvar.1} parent=11 // pred_check_branch
        %123 = sbr.rel (%p121) target = $region20
      $region19: #{encode_mean_logvar.1} parent=11 // pred_region
        _
      $region20: #{encode_mean_logvar.1} parent=11 // pred_fallthru
        _
    $region12: #{encode_mean_logvar.1} parent=5 // pred_fallthru
      _
    %p124 = scmp.lt.s32.totalorder %s9, 2
    // Predicated region
    $region21: #{encode_mean_logvar.1} parent=5 // pred_check
      %p125 = pneg %p124
    $region22: #{encode_mean_logvar.1} parent=5 // pred_check_branch
      %127 = sbr.rel (%p125) target = $region24
    $region23: #{encode_mean_logvar.1} parent=5 // pred_region
      // Predicated region
      $region25: #{encode_mean_logvar.1} parent=23 // pred_check
        %p128 = pneg %p29
      $region26: #{encode_mean_logvar.1} parent=23 // pred_check_branch
        %130 = sbr.rel (%p128) target = $region28
      $region27: #{encode_mean_logvar.1} parent=23 // pred_region
        %p131 = scmp.lt.s32.totalorder %s9, 1
        %s132 = scalar_select %p131, %s9, 1
        %s133 = smul.addr %s132, 12
        %s134 = smul.addr %s133, 4
        %s135 = scalar_lea.vmem %s0, %s134
      $region28: #{encode_mean_logvar.1} parent=23 // pred_fallthru
        _
    $region24: #{encode_mean_logvar.1} parent=5 // pred_fallthru
      _
    %p136 = scmp.le.s32.totalorder 1, %s9
    %p137 = scmp.lt.s32.totalorder %s9, 3
    %p138 = pnand %p136, %p137
    %p139 = pneg %p138
    // Predicated region
    $region29: #{encode_mean_logvar.1} parent=5 // pred_check
      _
    $region30: #{encode_mean_logvar.1} parent=5 // pred_check_branch
      %141 = sbr.rel (%p138) target = $region32
    $region31: #{encode_mean_logvar.1} parent=5 // pred_region
      %s142 = ssub.s32 %s9, 1
      %p143 = scmp.lt.s32.totalorder %s14, 1
      %s144 = scalar_select %p143, %s14, 1
      %s145 = smul.addr %s144, 12
      %s146 = smul.addr %s145, 4
      %s147 = scalar_lea.vmem %s0, %s146
      %p148 = pneg %p35
      %p149 = pneg %p32
      %p150 = pneg %p56
      %p151 = pneg %p53
      %p152 = pneg %p77
      %p153 = pneg %p74
      %p154 = pneg %p103
      %p155 = pneg %p100
      %p156 = scmp.lt.s32.totalorder %s14, 1
      %s157 = scalar_select %p156, %s14, 1
      %s158 = smul.addr %s157, 10
      %s159 = smul.addr %s158, 4
      %s160 = scalar_lea.vmem %s3, %s159
      %p161 = scmp.lt.s32.totalorder %s14, 1
      %s162 = scalar_select %p161, %s14, 1
      %s163 = smul.addr %s162, 12
      %s164 = smul.addr %s163, 4
      %s165 = scalar_lea.vmem %s0, %s164
      %p166 = scmp.lt.s32.totalorder %s14, 1
      %s167 = scalar_select %p166, %s14, 1
      %s168 = smul.addr %s167, 10
      %s169 = smul.addr %s168, 4
      %s170 = scalar_lea.vmem %s3, %s169
      %v172 = vld [vmem:[%s165] sm:$0xf]
      %v173 = vld [vmem:[%s165 + $0x4] sm:$0xf]
      %v174 = vld [vmem:[%s165 + $0x8] sm:$0xf]
      %v175 = vld [vmem:[%s165 + $0xc] sm:$0xf]
      %v176 = vld [vmem:[%s165 + $0x10] sm:$0xf]
      %v177 = vld [vmem:[%s165 + $0x14] sm:$0xf]
      %v178 = vld [vmem:[%s165 + $0x18] sm:$0xf]
      %v179 = vld [vmem:[%s165 + $0x1c] sm:$0xf]
      %v180 = vld [vmem:[%s165 + $0x20] sm:$0xf]
      %v181 = vld [vmem:[%s165 + $0x24] sm:$0xf]
      %v182 = vld [vmem:[%s165 + $0x28] sm:$0x1]
      %v183 = vld [vmem:[%s165 + $0x28] sm:$0xf]
      %v184 = vld [vmem:[%s165 + $0x2c] sm:$0x1]
      %v185 = vld [vmem:[%s165 + $0x4] sm:$0xe]
      %v196 = vunpack.c.l.b16 %v172
      %v197 = vunpack.c.l.b16 %v173
      %v198 = vunpack.c.l.b16 %v174
      %v199 = vunpack.c.l.b16 %v175
      %v200 = vunpack.c.l.b16 %v176
      %v201 = vunpack.c.l.b16 %v177
      %v202 = vunpack.c.l.b16 %v178
      %v203 = vunpack.c.l.b16 %v179
      %v204 = vunpack.c.l.b16 %v180
      %v205 = vunpack.c.l.b16 %v181
      %v206 = vpack.c.b16 %v197, %v196
      %v207 = vpack.c.b16 %v199, %v198
      %v208 = vpack.c.b16 %v201, %v200
      %v209 = vpack.c.b16 %v203, %v202
      %v210 = vpack.c.b16 %v205, %v204
      %v212 = vunpack.c.l.b16 %v182
      %v213 = vpack.c.b16 %v212, %v212
      %vm214 = vsmask.f32 7424
      %v216 = vshrl.u32 %v206, 16
      %v218 = vshll.u32 %v206, 16
      %v220 = vrot.slane %v218, 1
      %v221 = vor.u32 %v216, %v220
      %v223 = vshll.u32 %v207, 16
      %v225 = vrot.slane %v223, 1
      %v226 = vsel %vm214, %v221, %v225
      %v227 = vshrl.u32 %v207, 16
      %v229 = vor.u32 %v227, %v225
      %v231 = vshll.u32 %v208, 16
      %v233 = vrot.slane %v231, 1
      %v234 = vsel %vm214, %v229, %v233
      %v235 = vshrl.u32 %v208, 16
      %v237 = vor.u32 %v235, %v233
      %v239 = vshll.u32 %v209, 16
      %v241 = vrot.slane %v239, 1
      %v242 = vsel %vm214, %v237, %v241
      %v243 = vshrl.u32 %v209, 16
      %v245 = vor.u32 %v243, %v241
      %v247 = vshll.u32 %v210, 16
      %v249 = vrot.slane %v247, 1
      %v250 = vsel %vm214, %v245, %v249
      %v251 = vshrl.u32 %v210, 16
      %v253 = vor.u32 %v251, %v249
      %v255 = vshll.u32 %v213, 16
      %v257 = vrot.slane %v255, 1
      %v258 = vsel %vm214, %v253, %v257
      %259 = vrot.lane.b32.xlu0 %v226, 16
      %v260 = vpop.permute.xlu0 %259
      %261 = vrot.lane.b32.xlu0 %v234, 16
      %v262 = vpop.permute.xlu0 %261
      %263 = vrot.lane.b32.xlu0 %v242, 16
      %v264 = vpop.permute.xlu0 %263
      %265 = vrot.lane.b32.xlu0 %v250, 16
      %v266 = vpop.permute.xlu0 %265
      %267 = vrot.lane.b32.xlu0 %v258, 16
      %v268 = vpop.permute.xlu0 %267
      %v271 = vunpack.c.l.b16 %v183
      %v272 = vunpack.c.l.b16 %v184
      %v273 = vpack.c.b16 %v198, %v197
      %v274 = vpack.c.b16 %v200, %v199
      %v275 = vpack.c.b16 %v202, %v201
      %v276 = vpack.c.b16 %v204, %v203
      %v277 = vpack.c.b16 %v271, %v205
      %v278 = vpack.c.b16 %v272, %v272
      %v280 = vshrl.u32 %v273, 16
      %v282 = vshll.u32 %v273, 16
      %v284 = vrot.slane %v282, 1
      %v285 = vor.u32 %v280, %v284
      %v287 = vshll.u32 %v274, 16
      %v289 = vrot.slane %v287, 1
      %v290 = vsel %vm214, %v285, %v289
      %v291 = vshrl.u32 %v274, 16
      %v293 = vor.u32 %v291, %v289
      %v295 = vshll.u32 %v275, 16
      %v297 = vrot.slane %v295, 1
      %v298 = vsel %vm214, %v293, %v297
      %v299 = vshrl.u32 %v275, 16
      %v301 = vor.u32 %v299, %v297
      %v303 = vshll.u32 %v276, 16
      %v305 = vrot.slane %v303, 1
      %v306 = vsel %vm214, %v301, %v305
      %v307 = vshrl.u32 %v276, 16
      %v309 = vor.u32 %v307, %v305
      %v311 = vshll.u32 %v277, 16
      %v313 = vrot.slane %v311, 1
      %v314 = vsel %vm214, %v309, %v313
      %v315 = vshrl.u32 %v277, 16
      %v317 = vor.u32 %v315, %v313
      %v319 = vshll.u32 %v278, 16
      %v321 = vrot.slane %v319, 1
      %v322 = vsel %vm214, %v317, %v321
      %323 = vrot.lane.b32.xlu0 %v290, 32
      %v324 = vpop.permute.xlu0 %323
      %325 = vrot.lane.b32.xlu0 %v298, 32
      %v326 = vpop.permute.xlu0 %325
      %327 = vrot.lane.b32.xlu0 %v306, 32
      %v328 = vpop.permute.xlu0 %327
      %329 = vrot.lane.b32.xlu0 %v314, 32
      %v330 = vpop.permute.xlu0 %329
      %331 = vrot.lane.b32.xlu0 %v322, 32
      %v332 = vpop.permute.xlu0 %331
      %v334 = vunpack.c.l.b16 %v185
      %v335 = vpack.c.b16 %v198, %v334
      %vm336 = vcmask 1046528
      %v337 = vrot.slane %v335, 1
      %v338 = vrot.slane %v274, 1
      %v339 = vsel %vm336, %v337, %v338
      %v340 = vrot.slane %v275, 1
      %v341 = vsel %vm336, %v338, %v340
      %v342 = vrot.slane %v276, 1
      %v343 = vsel %vm336, %v340, %v342
      %v344 = vrot.slane %v277, 1
      %v345 = vsel %vm336, %v342, %v344
      %v346 = vrot.slane %v278, 1
      %v347 = vsel %vm336, %v344, %v346
      %348 = vrot.lane.b32.xlu0 %v339, 48
      %v349 = vpop.permute.xlu0 %348
      %350 = vrot.lane.b32.xlu0 %v341, 48
      %v351 = vpop.permute.xlu0 %350
      %352 = vrot.lane.b32.xlu0 %v343, 48
      %v353 = vpop.permute.xlu0 %352
      %354 = vrot.lane.b32.xlu0 %v345, 48
      %v355 = vpop.permute.xlu0 %354
      %356 = vrot.lane.b32.xlu0 %v347, 48
      %v357 = vpop.permute.xlu0 %356
      %vm358 = vcmask 130048
      %v360 = vsel %vm358, %v206, %v260
      %v362 = vsel %vm358, %v207, %v262
      %v364 = vsel %vm358, %v208, %v264
      %v366 = vsel %vm358, %v209, %v266
      %v368 = vsel %vm358, %v210, %v268
      %vm369 = vcmask 261120
      %v371 = vsel %vm369, %v360, %v324
      %v373 = vsel %vm369, %v362, %v326
      %v375 = vsel %vm369, %v364, %v328
      %v377 = vsel %vm369, %v366, %v330
      %v379 = vsel %vm369, %v368, %v332
      %vm380 = vcmask 392192
      %v382 = vsel %vm380, %v371, %v349
      %v384 = vsel %vm380, %v373, %v351
      %v386 = vsel %vm380, %v375, %v353
      %v388 = vsel %vm380, %v377, %v355
      %v390 = vsel %vm380, %v379, %v357
      %v391 = vld [vmem:[%s1] sm:$0xf]
      %v392 = vld [vmem:[%s1 + $0x4] sm:$0xf]
      %v393 = vld [vmem:[%s1 + $0x8] sm:$0xf]
      %v394 = vld [vmem:[%s1 + $0xc] sm:$0xf]
      %v395 = vld [vmem:[%s1 + $0x10] sm:$0xf]
      %v396 = vld [vmem:[%s1 + $0x14] sm:$0xf]
      %v397 = vld [vmem:[%s1 + $0x18] sm:$0xf]
      %v398 = vld [vmem:[%s1 + $0x1c] sm:$0xf]
      %v399 = vld [vmem:[%s2] sm:$0x1]
      %v401 = vlaneseq
      %v402 = vshrl.u32 %v401, 7
      %v403 = vsub.s32 0, %v402
      %v404 = vrot.slane %v399, %v403
      %v414 = vunpack.c.l.b16 %v391
      %v415 = vunpack.c.l.b16 %v392
      %v416 = vunpack.c.l.b16 %v393
      %v417 = vunpack.c.l.b16 %v394
      %v418 = vunpack.c.l.b16 %v395
      %v419 = vunpack.c.l.b16 %v396
      %v420 = vunpack.c.l.b16 %v397
      %v421 = vunpack.c.l.b16 %v398
      %v422 = vpack.c.b16 %v415, %v414
      %v423 = vpack.c.b16 %v417, %v416
      %v424 = vpack.c.b16 %v419, %v418
      %v425 = vpack.c.b16 %v421, %v420
      %vm430 = vcmask 523264
      %v431 = vsel %vm430, %v382, 0
      %v433 = vsel %vm430, %v384, 0
      %v435 = vsel %vm430, %v386, 0
      %v437 = vsel %vm430, %v388, 0
      %v439 = vsel %vm430, %v390, 0
      %441 = vmatprep.subr.bf16.mxu0 0
      %442 = vmatpush1.bf16.msra.mxu0 0
      %443 = vmatprep.subr.bf16.mxu0 0
      %444 = vmatpush1.bf16.msra.mxu0 0
      %445 = vmatprep.subr.bf16.mxu0 0
      %446 = vmatpush1.bf16.msra.mxu0 0
      %447 = vmatprep.subr.bf16.mxu0 0
      %448 = vmatpush1.bf16.msra.mxu0 0
      %449 = vmatprep.subr.bf16.mxu0 0
      %450 = vmatpush1.bf16.msra.mxu0 %v425
      %451 = vmatprep.subr.bf16.mxu0 0
      %452 = vmatpush1.bf16.msra.mxu0 %v424
      %453 = vmatprep.subr.bf16.mxu0 0
      %454 = vmatpush1.bf16.msra.mxu0 %v423
      %455 = vmatprep.subr.bf16.mxu0 0
      %456 = vmatpush1.bf16.msra.mxu0 %v422
      %457 = vmatprep.subr.bf16.mxu0 0
      %458 = vmatpush2.bf16.msra.mxu0 0
      %459 = vmatprep.subr.bf16.mxu0 0
      %460 = vmatpush2.bf16.msra.mxu0 0
      %461 = vmatprep.subr.bf16.mxu0 0
      %462 = vmatpush2.bf16.msra.mxu0 0
      %463 = vmatprep.subr.bf16.mxu0 0
      %464 = vmatpush2.bf16.msra.mxu0 0
      %465 = vmatprep.subr.bf16.mxu0 0
      %466 = vmatpush2.bf16.msra.mxu0 0
      %467 = vmatprep.subr.bf16.mxu0 0
      %468 = vmatpush2.bf16.msra.mxu0 0
      %469 = vmatprep.subr.bf16.mxu0 0
      %470 = vmatpush2.bf16.msra.mxu0 0
      %471 = vmatprep.subr.bf16.mxu0 0
      %472 = vmatpush2.bf16.msra.mxu0 0
      %473 = vmatprep.mubr.bf16.mxu0 0
      %474 = vmatmul.mubr.bf16.gmra.mxu0 %v431
      %v475 = vpop.f32.mrf.mxu0
      %v476 = vadd.f32 %v404, %v475
      %v477 = vpop.f32.mrf.mxu0
      %v478 = vpop.f32.mrf.mxu0
      %v479 = vadd.f32 %v404, %v478
      %v480 = vpop.f32.mrf.mxu0
      %481 = vmatprep.mubr.bf16.mxu0 0
      %482 = vmatmul.mubr.bf16.gmra.mxu0 %v433
      %v483 = vpop.f32.mrf.mxu0
      %v484 = vadd.f32 %v404, %v483
      %v485 = vpop.f32.mrf.mxu0
      %v486 = vpop.f32.mrf.mxu0
      %v487 = vadd.f32 %v404, %v486
      %v488 = vpop.f32.mrf.mxu0
      %489 = vmatprep.mubr.bf16.mxu0 0
      %490 = vmatmul.mubr.bf16.gmra.mxu0 %v435
      %v491 = vpop.f32.mrf.mxu0
      %v492 = vadd.f32 %v404, %v491
      %v493 = vpop.f32.mrf.mxu0
      %v494 = vpop.f32.mrf.mxu0
      %v495 = vadd.f32 %v404, %v494
      %v496 = vpop.f32.mrf.mxu0
      %497 = vmatprep.mubr.bf16.mxu0 0
      %498 = vmatmul.mubr.bf16.gmra.mxu0 %v437
      %v499 = vpop.f32.mrf.mxu0
      %v500 = vadd.f32 %v404, %v499
      %v501 = vpop.f32.mrf.mxu0
      %v502 = vpop.f32.mrf.mxu0
      %v503 = vadd.f32 %v404, %v502
      %v504 = vpop.f32.mrf.mxu0
      %505 = vmatprep.mubr.bf16.mxu0 0
      %506 = vmatmul.mubr.bf16.gmra.mxu0 %v439
      %v507 = vpop.f32.mrf.mxu0
      %v508 = vadd.f32 %v404, %v507
      %v509 = vpop.f32.mrf.mxu0
      %v510 = vpop.f32.mrf.mxu0
      %v511 = vadd.f32 %v404, %v510
      %v512 = vpop.f32.mrf.mxu0
      %513 = vdwg.mxu0
      %v514 = vpack.c.bf16 %v479, %v476
      %v515 = vpack.c.bf16 %v487, %v484
      %v516 = vpack.c.bf16 %v495, %v492
      %v517 = vpack.c.bf16 %v503, %v500
      %v518 = vpack.c.bf16 %v511, %v508
      %v524 = vunpack.c.l.b16 %v514
      %v525 = vunpack.c.h.b16 %v514
      %v526 = vunpack.c.l.b16 %v515
      %v527 = vunpack.c.h.b16 %v515
      %v528 = vunpack.c.l.b16 %v516
      %v529 = vunpack.c.h.b16 %v516
      %v530 = vunpack.c.l.b16 %v517
      %v531 = vunpack.c.h.b16 %v517
      %v532 = vunpack.c.l.b16 %v518
      %v533 = vunpack.c.h.b16 %v518
      %v534 = vpack.c.b16 %v524, %v524
      %v535 = vpack.c.b16 %v525, %v525
      %v536 = vpack.c.b16 %v526, %v526
      %v537 = vpack.c.b16 %v527, %v527
      %v538 = vpack.c.b16 %v528, %v528
      %v539 = vpack.c.b16 %v529, %v529
      %v540 = vpack.c.b16 %v530, %v530
      %v541 = vpack.c.b16 %v531, %v531
      %v542 = vpack.c.b16 %v532, %v532
      %v543 = vpack.c.b16 %v533, %v533
      %554 = vst [vmem:[%s170] sm:$0xf] %v534
      %555 = vst [vmem:[%s170 + $0x4] sm:$0xf] %v535
      %556 = vst [vmem:[%s170 + $0x8] sm:$0xf] %v536
      %557 = vst [vmem:[%s170 + $0xc] sm:$0xf] %v537
      %558 = vst [vmem:[%s170 + $0x10] sm:$0xf] %v538
      %559 = vst [vmem:[%s170 + $0x14] sm:$0xf] %v539
      %560 = vst [vmem:[%s170 + $0x18] sm:$0xf] %v540
      %561 = vst [vmem:[%s170 + $0x1c] sm:$0xf] %v541
      %562 = vst [vmem:[%s170 + $0x20] sm:$0xf] %v542
      %563 = vst [vmem:[%s170 + $0x24] sm:$0xf] %v543
      %p564 = scmp.lt.s32.totalorder %s14, 1
      %s565 = scalar_select %p564, %s14, 1
      %s566 = smul.addr %s565, 10
      %s567 = smul.addr %s566, 4
      %s568 = scalar_lea.vmem %s3, %s567
      // Predicated region
      $region33: #{encode_mean_logvar.1} parent=31 // pred_check
        %p569 = pneg %p100
      $region34: #{encode_mean_logvar.1} parent=31 // pred_check_branch
        %571 = sbr.rel (%p569) target = $region36
      $region35: #{encode_mean_logvar.1} parent=31 // pred_region
        _
      $region36: #{encode_mean_logvar.1} parent=31 // pred_fallthru
        _
    $region32: #{encode_mean_logvar.1} parent=5 // pred_fallthru
      _
    %p572 = scmp.le.s32.totalorder 2, %s9
    // Predicated region
    $region37: #{encode_mean_logvar.1} parent=5 // pred_check
      %p573 = pneg %p572
    $region38: #{encode_mean_logvar.1} parent=5 // pred_check_branch
      %575 = sbr.rel (%p573) target = $region40
    $region39: #{encode_mean_logvar.1} parent=5 // pred_region
      %s576 = ssub.s32 %s9, 2
      // Predicated region
      $region41: #{encode_mean_logvar.1} parent=39 // pred_check
        %p577 = pneg %p106
      $region42: #{encode_mean_logvar.1} parent=39 // pred_check_branch
        %579 = sbr.rel (%p577) target = $region44
      $region43: #{encode_mean_logvar.1} parent=39 // pred_region
        %p580 = scmp.lt.s32.totalorder %s15, 1
        %s581 = scalar_select %p580, %s15, 1
        %s582 = smul.addr %s581, 10
        %s583 = smul.addr %s582, 4
        %s584 = scalar_lea.vmem %s3, %s583
      $region44: #{encode_mean_logvar.1} parent=39 // pred_fallthru
        _
    $region40: #{encode_mean_logvar.1} parent=5 // pred_fallthru
      _
  $region6: #{encode_mean_logvar.1} parent=0 // loop_footer
    %s13 = sadd.s32 1, %s9
  $region7: #{encode_mean_logvar.1} parent=0 // loop_footer_branch
    %8 = sbr.rel target = $region3
  $region8: #{encode_mean_logvar.1} parent=0 // loop_exit
    _

</llo_original>
